<compile_context>
chip_gen: v6e
topology: v6e:2x2x1
jax: 0.10.0
libtpu: 0.0.40
codegen_flags: <defaults>
</compile_context>

<pallas_src>
import jax
import jax.numpy as jnp
from jax.experimental import pallas as pl
from jax.experimental.pallas import tpu as pltpu

INPUT_SIZE = 1
HIDDEN_SIZE = 16
OUTPUT_SIZE = 1


def rnn_kernel(x_row_ref, x_col_ref, wmat_ref, prow_ref, pcol_ref,
               out_ref, hT_ref):
    """Sequential RNN recurrence + linear head, all on the VPU/XLU/EUP.

    x_row_ref : (1, seq)   input sequence, lane-oriented
    x_col_ref : (seq, 1)   input sequence, sublane-oriented
    wmat_ref  : (2H, H)    rows 0..H-1 = W_hh, rows H..2H-1 = W_hh^T
    prow_ref  : (5, H)     rows: h0, b_ih+b_hh, w_ih, w_lin, b_lin (broadcast)
    pcol_ref  : (H, 3)     cols: b_ih+b_hh, w_ih, w_lin (column-oriented)
    out_ref   : (1, seq)   per-step Linear outputs (lane-dense)
    hT_ref    : (1,H) or (H,1)  final hidden state (orientation = seq parity)
    """
    seq = x_row_ref.shape[1]
    H = wmat_ref.shape[1]

    wmat = wmat_ref[...]
    whh = wmat[0:H, :]          # whh[j, k]   = W_hh[j, k]
    whh_t = wmat[H:2 * H, :]    # whh_t[k, j] = W_hh[j, k]

    prow = prow_ref[...]
    h_row = prow[0:1, :]        # initial hidden, row-oriented (1, H)
    b_row = prow[1:2, :]
    wih_row = prow[2:3, :]
    wlin_row = prow[3:4, :]
    blin = prow[4:5, 0:1]       # (1, 1)

    pcol = pcol_ref[...]
    b_col = pcol[:, 0:1]        # (H, 1)
    wih_col = pcol[:, 1:2]
    wlin_col = pcol[:, 2:3]

    # Hoisted input projection + bias for ALL timesteps, in BOTH orientations
    # (pure VPU outer products since INPUT_SIZE == 1).  Off the serial chain.
    pre_rows = x_col_ref[...] * wih_row + b_row     # (seq, H)
    pre_cols = wih_col * x_row_ref[...] + b_col     # (H, seq)

    lane_t = jax.lax.broadcasted_iota(jnp.int32, (1, seq), 1)
    out_acc = jnp.zeros((1, seq), jnp.float32)

    # Serial recurrence, fully unrolled (seq is static and small).  h flips
    # between row and column orientation each step, so the matvec is always a
    # broadcast-multiply + 16-wide reduce -- never an MXU op, never a transpose.
    # TODO(synk): for long sequences, chunk this loop (fori_loop over pairs of
    # steps) instead of full unrolling.
    h_col = None
    for t in range(seq):
        if t % 2 == 0:
            # h is a row (1,H): contrib[j] = sum_k W_hh[j,k] * h[k]
            contrib = jnp.sum(whh * h_row, axis=1, keepdims=True)      # (H,1)
            h_col = jnp.tanh(pre_cols[:, t:t + 1] + contrib)           # (H,1)
            y = jnp.sum(wlin_col * h_col, axis=0, keepdims=True) + blin
        else:
            # h is a column (H,1): contrib[j] = sum_k W_hh^T[k,j] * h[k]
            contrib = jnp.sum(whh_t * h_col, axis=0, keepdims=True)    # (1,H)
            h_row = jnp.tanh(pre_rows[t:t + 1, :] + contrib)           # (1,H)
            y = jnp.sum(h_row * wlin_row, axis=1, keepdims=True) + blin
        # Per-step Linear output into lane t (off the serial h chain).
        out_acc = out_acc + y * (lane_t == t).astype(jnp.float32)

    out_ref[...] = out_acc                      # single lane-dense store
    if seq % 2 == 0:
        hT_ref[...] = h_row                     # (1, H)
    else:
        hT_ref[...] = h_col                     # (H, 1)


@jax.jit
def net_forward(x, hidden_prev, params):
    """x: (1, seq, INPUT_SIZE) f32 ; hidden_prev: (1, 1, H) f32.

    Returns (out, hidden) with out: (1, seq, 1), hidden: (1, 1, H) — exactly
    like Net.forward (out.view(-1, H) -> Linear -> unsqueeze(0)).
    """
    seq = x.shape[1]
    assert x.shape[0] == 1 and x.shape[2] == INPUT_SIZE
    assert INPUT_SIZE == 1 and OUTPUT_SIZE == 1
    # TODO(synk): INPUT_SIZE > 1 needs a (seq,I)@(I,H) input-projection path.

    xf = x.reshape(seq).astype(jnp.float32)
    x_row = xf.reshape(1, seq)
    x_col = xf.reshape(seq, 1)

    whh = params["w_hh"].astype(jnp.float32)                       # (H, H)
    wmat = jnp.concatenate([whh, whh.T], axis=0)                   # (2H, H)

    h0 = hidden_prev.reshape(HIDDEN_SIZE).astype(jnp.float32)
    b = (params["b_ih"] + params["b_hh"]).astype(jnp.float32)      # (H,)
    wih = params["w_ih"].reshape(HIDDEN_SIZE).astype(jnp.float32)  # (H,) (I==1)
    wlin = params["w_lin"].reshape(HIDDEN_SIZE).astype(jnp.float32)
    blin = params["b_lin"].reshape(()).astype(jnp.float32)

    prow = jnp.stack(
        [h0, b, wih, wlin, jnp.full((HIDDEN_SIZE,), blin, jnp.float32)],
        axis=0)                                                    # (5, H)
    pcol = jnp.stack([b, wih, wlin], axis=1)                       # (H, 3)

    vmem = pl.BlockSpec(memory_space=pltpu.MemorySpace.VMEM)
    hT_shape = (1, HIDDEN_SIZE) if seq % 2 == 0 else (HIDDEN_SIZE, 1)
    out_row, hT = pl.pallas_call(
        rnn_kernel,
        out_shape=(jax.ShapeDtypeStruct((1, seq), jnp.float32),
                   jax.ShapeDtypeStruct(hT_shape, jnp.float32)),
        in_specs=[vmem] * 5,
        out_specs=(vmem, vmem),
    )(x_row, x_col, wmat, prow, pcol)

    out = out_row.reshape(1, seq, OUTPUT_SIZE)     # layout plumbing only
    hidden = hT.reshape(1, 1, HIDDEN_SIZE)
    return out, hidden


if __name__ == "__main__":
    key = jax.random.PRNGKey(0)
    k1, k2, k3, k4, k5, k6, kx = jax.random.split(key, 7)

    # RNN params: normal(mean=0, std=0.001) as in the module's __init__.
    # Linear params: PyTorch default init U(-1/sqrt(H), 1/sqrt(H)) = U(-0.25, 0.25).
    params = {
        "w_ih": 0.001 * jax.random.normal(k1, (HIDDEN_SIZE, INPUT_SIZE), jnp.float32),
        "w_hh": 0.001 * jax.random.normal(k2, (HIDDEN_SIZE, HIDDEN_SIZE), jnp.float32),
        "b_ih": 0.001 * jax.random.normal(k3, (HIDDEN_SIZE,), jnp.float32),
        "b_hh": 0.001 * jax.random.normal(k4, (HIDDEN_SIZE,), jnp.float32),
        "w_lin": jax.random.uniform(k5, (OUTPUT_SIZE, HIDDEN_SIZE), jnp.float32,
                                    -0.25, 0.25),
        "b_lin": jax.random.uniform(k6, (OUTPUT_SIZE,), jnp.float32, -0.25, 0.25),
    }

    seq = 8
    x = jax.random.normal(kx, (1, seq, INPUT_SIZE), jnp.float32)
    hidden_prev = jnp.zeros((1, 1, HIDDEN_SIZE), jnp.float32)

    out, hT = net_forward(x, hidden_prev, params)
    jax.block_until_ready((out, hT))

    # Pure-JAX reference (highest matmul precision so the tolerance check is
    # not polluted by bf16 MXU passes in the reference itself).
    hi = jax.lax.Precision.HIGHEST

    def ref(x, h0):
        h = h0.reshape(1, HIDDEN_SIZE)
        hs = []
        for t in range(seq):
            xt = x[0, t:t + 1, :]
            h = jnp.tanh(jnp.dot(xt, params["w_ih"].T, precision=hi)
                         + jnp.dot(h, params["w_hh"].T, precision=hi)
                         + params["b_ih"] + params["b_hh"])
            hs.append(h)
        hs = jnp.concatenate(hs, 0)
        y = jnp.dot(hs, params["w_lin"].T, precision=hi) + params["b_lin"]
        return y[None], h.reshape(1, 1, HIDDEN_SIZE)

    y_ref, h_ref = ref(x, hidden_prev)
    assert out.shape == (1, seq, OUTPUT_SIZE) and hT.shape == (1, 1, HIDDEN_SIZE)
    assert jnp.allclose(out, y_ref, atol=1e-5), "output mismatch vs reference"
    assert jnp.allclose(hT, h_ref, atol=1e-5), "hidden mismatch vs reference"

    print("KERNEL_OK")
</pallas_src>

<mosaic_0001>
module attributes {stable_mosaic.version = 11 : i64} {
  func.func @rnn_kernel(%arg0: memref<1x8xf32, #tpu.memory_space<vmem>>, %arg1: memref<8x1xf32, #tpu.memory_space<vmem>>, %arg2: memref<32x16xf32, #tpu.memory_space<vmem>>, %arg3: memref<5x16xf32, #tpu.memory_space<vmem>>, %arg4: memref<16x3xf32, #tpu.memory_space<vmem>>, %arg5: memref<1x8xf32, #tpu.memory_space<vmem>>, %arg6: memref<1x16xf32, #tpu.memory_space<vmem>>) attributes {dimension_semantics = [], scalar_prefetch = 0 : i64, scratch_operands = 0 : i64, tpu.core_type = #tpu.core_type<tc>} {
    %c0 = arith.constant 0 : index
    %c0_0 = arith.constant 0 : index
    %0 = vector.load %arg2[%c0, %c0_0] : memref<32x16xf32, #tpu.memory_space<vmem>>, vector<32x16xf32>
    %1 = vector.extract_strided_slice %0 {offsets = [0, 0], sizes = [16, 16], strides = [1, 1]} : vector<32x16xf32> to vector<16x16xf32>
    %2 = vector.extract_strided_slice %0 {offsets = [16, 0], sizes = [16, 16], strides = [1, 1]} : vector<32x16xf32> to vector<16x16xf32>
    %c0_1 = arith.constant 0 : index
    %c0_2 = arith.constant 0 : index
    %3 = vector.load %arg3[%c0_1, %c0_2] : memref<5x16xf32, #tpu.memory_space<vmem>>, vector<5x16xf32>
    %4 = vector.extract_strided_slice %3 {offsets = [0, 0], sizes = [1, 16], strides = [1, 1]} : vector<5x16xf32> to vector<1x16xf32>
    %5 = vector.extract_strided_slice %3 {offsets = [1, 0], sizes = [1, 16], strides = [1, 1]} : vector<5x16xf32> to vector<1x16xf32>
    %6 = vector.extract_strided_slice %3 {offsets = [2, 0], sizes = [1, 16], strides = [1, 1]} : vector<5x16xf32> to vector<1x16xf32>
    %7 = vector.extract_strided_slice %3 {offsets = [3, 0], sizes = [1, 16], strides = [1, 1]} : vector<5x16xf32> to vector<1x16xf32>
    %8 = vector.extract_strided_slice %3 {offsets = [4, 0], sizes = [1, 1], strides = [1, 1]} : vector<5x16xf32> to vector<1x1xf32>
    %c0_3 = arith.constant 0 : index
    %c0_4 = arith.constant 0 : index
    %9 = vector.load %arg4[%c0_3, %c0_4] : memref<16x3xf32, #tpu.memory_space<vmem>>, vector<16x3xf32>
    %10 = vector.extract_strided_slice %9 {offsets = [0, 0], sizes = [16, 1], strides = [1, 1]} : vector<16x3xf32> to vector<16x1xf32>
    %11 = vector.extract_strided_slice %9 {offsets = [0, 1], sizes = [16, 1], strides = [1, 1]} : vector<16x3xf32> to vector<16x1xf32>
    %12 = vector.extract_strided_slice %9 {offsets = [0, 2], sizes = [16, 1], strides = [1, 1]} : vector<16x3xf32> to vector<16x1xf32>
    %c0_5 = arith.constant 0 : index
    %c0_6 = arith.constant 0 : index
    %13 = vector.load %arg1[%c0_5, %c0_6] : memref<8x1xf32, #tpu.memory_space<vmem>>, vector<8x1xf32>
    %14 = vector.broadcast %13 : vector<8x1xf32> to vector<8x16xf32>
    %15 = vector.broadcast %6 : vector<1x16xf32> to vector<8x16xf32>
    %16 = arith.mulf %14, %15 : vector<8x16xf32>
    %17 = vector.broadcast %5 : vector<1x16xf32> to vector<8x16xf32>
    %18 = arith.addf %16, %17 : vector<8x16xf32>
    %c0_7 = arith.constant 0 : index
    %c0_8 = arith.constant 0 : index
    %19 = vector.load %arg0[%c0_7, %c0_8] : memref<1x8xf32, #tpu.memory_space<vmem>>, vector<1x8xf32>
    %20 = vector.broadcast %11 : vector<16x1xf32> to vector<16x8xf32>
    %21 = vector.broadcast %19 : vector<1x8xf32> to vector<16x8xf32>
    %22 = arith.mulf %20, %21 : vector<16x8xf32>
    %23 = vector.broadcast %10 : vector<16x1xf32> to vector<16x8xf32>
    %24 = arith.addf %22, %23 : vector<16x8xf32>
    %25 = tpu.iota {dimensions = array<i32: 1>} : vector<1x8xi32>
    %cst = arith.constant 0.000000e+00 : f32
    %26 = vector.broadcast %cst : f32 to vector<1x8xf32>
    %27 = vector.broadcast %4 : vector<1x16xf32> to vector<16x16xf32>
    %28 = arith.mulf %1, %27 : vector<16x16xf32>
    %cst_9 = arith.constant dense<0.000000e+00> : vector<16xf32>
    %29 = vector.multi_reduction <add>, %28, %cst_9 [1] : vector<16x16xf32> to vector<16xf32>
    %30 = vector.shape_cast %29 : vector<16xf32> to vector<16x1xf32>
    %31 = vector.extract_strided_slice %24 {offsets = [0, 0], sizes = [16, 1], strides = [1, 1]} : vector<16x8xf32> to vector<16x1xf32>
    %32 = arith.addf %31, %30 : vector<16x1xf32>
    %33 = math.tanh %32 : vector<16x1xf32>
    %34 = arith.mulf %12, %33 : vector<16x1xf32>
    %cst_10 = arith.constant dense<0.000000e+00> : vector<1xf32>
    %35 = vector.multi_reduction <add>, %34, %cst_10 [0] : vector<16x1xf32> to vector<1xf32>
    %36 = vector.shape_cast %35 : vector<1xf32> to vector<1x1xf32>
    %37 = arith.addf %36, %8 : vector<1x1xf32>
    %c0_i32 = arith.constant 0 : i32
    %38 = vector.broadcast %c0_i32 : i32 to vector<1x8xi32>
    %39 = arith.cmpi eq, %25, %38 : vector<1x8xi32>
    %40 = arith.extui %39 : vector<1x8xi1> to vector<1x8xi32>
    %41 = arith.sitofp %40 : vector<1x8xi32> to vector<1x8xf32>
    %42 = vector.broadcast %37 : vector<1x1xf32> to vector<1x8xf32>
    %43 = arith.mulf %42, %41 : vector<1x8xf32>
    %44 = arith.addf %26, %43 : vector<1x8xf32>
    %45 = vector.broadcast %33 : vector<16x1xf32> to vector<16x16xf32>
    %46 = arith.mulf %2, %45 : vector<16x16xf32>
    %cst_11 = arith.constant dense<0.000000e+00> : vector<16xf32>
    %47 = vector.multi_reduction <add>, %46, %cst_11 [0] : vector<16x16xf32> to vector<16xf32>
    %48 = vector.shape_cast %47 : vector<16xf32> to vector<1x16xf32>
    %49 = vector.extract_strided_slice %18 {offsets = [1, 0], sizes = [1, 16], strides = [1, 1]} : vector<8x16xf32> to vector<1x16xf32>
    %50 = arith.addf %49, %48 : vector<1x16xf32>
    %51 = math.tanh %50 : vector<1x16xf32>
    %52 = arith.mulf %51, %7 : vector<1x16xf32>
    %cst_12 = arith.constant dense<0.000000e+00> : vector<1xf32>
    %53 = vector.multi_reduction <add>, %52, %cst_12 [1] : vector<1x16xf32> to vector<1xf32>
    %54 = vector.shape_cast %53 : vector<1xf32> to vector<1x1xf32>
    %55 = arith.addf %54, %8 : vector<1x1xf32>
    %c1_i32 = arith.constant 1 : i32
    %56 = vector.broadcast %c1_i32 : i32 to vector<1x8xi32>
    %57 = arith.cmpi eq, %25, %56 : vector<1x8xi32>
    %58 = arith.extui %57 : vector<1x8xi1> to vector<1x8xi32>
    %59 = arith.sitofp %58 : vector<1x8xi32> to vector<1x8xf32>
    %60 = vector.broadcast %55 : vector<1x1xf32> to vector<1x8xf32>
    %61 = arith.mulf %60, %59 : vector<1x8xf32>
    %62 = arith.addf %44, %61 : vector<1x8xf32>
    %63 = vector.broadcast %51 : vector<1x16xf32> to vector<16x16xf32>
    %64 = arith.mulf %1, %63 : vector<16x16xf32>
    %cst_13 = arith.constant dense<0.000000e+00> : vector<16xf32>
    %65 = vector.multi_reduction <add>, %64, %cst_13 [1] : vector<16x16xf32> to vector<16xf32>
    %66 = vector.shape_cast %65 : vector<16xf32> to vector<16x1xf32>
    %67 = vector.extract_strided_slice %24 {offsets = [0, 2], sizes = [16, 1], strides = [1, 1]} : vector<16x8xf32> to vector<16x1xf32>
    %68 = arith.addf %67, %66 : vector<16x1xf32>
    %69 = math.tanh %68 : vector<16x1xf32>
    %70 = arith.mulf %12, %69 : vector<16x1xf32>
    %cst_14 = arith.constant dense<0.000000e+00> : vector<1xf32>
    %71 = vector.multi_reduction <add>, %70, %cst_14 [0] : vector<16x1xf32> to vector<1xf32>
    %72 = vector.shape_cast %71 : vector<1xf32> to vector<1x1xf32>
    %73 = arith.addf %72, %8 : vector<1x1xf32>
    %c2_i32 = arith.constant 2 : i32
    %74 = vector.broadcast %c2_i32 : i32 to vector<1x8xi32>
    %75 = arith.cmpi eq, %25, %74 : vector<1x8xi32>
    %76 = arith.extui %75 : vector<1x8xi1> to vector<1x8xi32>
    %77 = arith.sitofp %76 : vector<1x8xi32> to vector<1x8xf32>
    %78 = vector.broadcast %73 : vector<1x1xf32> to vector<1x8xf32>
    %79 = arith.mulf %78, %77 : vector<1x8xf32>
    %80 = arith.addf %62, %79 : vector<1x8xf32>
    %81 = vector.broadcast %69 : vector<16x1xf32> to vector<16x16xf32>
    %82 = arith.mulf %2, %81 : vector<16x16xf32>
    %cst_15 = arith.constant dense<0.000000e+00> : vector<16xf32>
    %83 = vector.multi_reduction <add>, %82, %cst_15 [0] : vector<16x16xf32> to vector<16xf32>
    %84 = vector.shape_cast %83 : vector<16xf32> to vector<1x16xf32>
    %85 = vector.extract_strided_slice %18 {offsets = [3, 0], sizes = [1, 16], strides = [1, 1]} : vector<8x16xf32> to vector<1x16xf32>
    %86 = arith.addf %85, %84 : vector<1x16xf32>
    %87 = math.tanh %86 : vector<1x16xf32>
    %88 = arith.mulf %87, %7 : vector<1x16xf32>
    %cst_16 = arith.constant dense<0.000000e+00> : vector<1xf32>
    %89 = vector.multi_reduction <add>, %88, %cst_16 [1] : vector<1x16xf32> to vector<1xf32>
    %90 = vector.shape_cast %89 : vector<1xf32> to vector<1x1xf32>
    %91 = arith.addf %90, %8 : vector<1x1xf32>
    %c3_i32 = arith.constant 3 : i32
    %92 = vector.broadcast %c3_i32 : i32 to vector<1x8xi32>
    %93 = arith.cmpi eq, %25, %92 : vector<1x8xi32>
    %94 = arith.extui %93 : vector<1x8xi1> to vector<1x8xi32>
    %95 = arith.sitofp %94 : vector<1x8xi32> to vector<1x8xf32>
    %96 = vector.broadcast %91 : vector<1x1xf32> to vector<1x8xf32>
    %97 = arith.mulf %96, %95 : vector<1x8xf32>
    %98 = arith.addf %80, %97 : vector<1x8xf32>
    %99 = vector.broadcast %87 : vector<1x16xf32> to vector<16x16xf32>
    %100 = arith.mulf %1, %99 : vector<16x16xf32>
    %cst_17 = arith.constant dense<0.000000e+00> : vector<16xf32>
    %101 = vector.multi_reduction <add>, %100, %cst_17 [1] : vector<16x16xf32> to vector<16xf32>
    %102 = vector.shape_cast %101 : vector<16xf32> to vector<16x1xf32>
    %103 = vector.extract_strided_slice %24 {offsets = [0, 4], sizes = [16, 1], strides = [1, 1]} : vector<16x8xf32> to vector<16x1xf32>
    %104 = arith.addf %103, %102 : vector<16x1xf32>
    %105 = math.tanh %104 : vector<16x1xf32>
    %106 = arith.mulf %12, %105 : vector<16x1xf32>
    %cst_18 = arith.constant dense<0.000000e+00> : vector<1xf32>
    %107 = vector.multi_reduction <add>, %106, %cst_18 [0] : vector<16x1xf32> to vector<1xf32>
    %108 = vector.shape_cast %107 : vector<1xf32> to vector<1x1xf32>
    %109 = arith.addf %108, %8 : vector<1x1xf32>
    %c4_i32 = arith.constant 4 : i32
    %110 = vector.broadcast %c4_i32 : i32 to vector<1x8xi32>
    %111 = arith.cmpi eq, %25, %110 : vector<1x8xi32>
    %112 = arith.extui %111 : vector<1x8xi1> to vector<1x8xi32>
    %113 = arith.sitofp %112 : vector<1x8xi32> to vector<1x8xf32>
    %114 = vector.broadcast %109 : vector<1x1xf32> to vector<1x8xf32>
    %115 = arith.mulf %114, %113 : vector<1x8xf32>
    %116 = arith.addf %98, %115 : vector<1x8xf32>
    %117 = vector.broadcast %105 : vector<16x1xf32> to vector<16x16xf32>
    %118 = arith.mulf %2, %117 : vector<16x16xf32>
    %cst_19 = arith.constant dense<0.000000e+00> : vector<16xf32>
    %119 = vector.multi_reduction <add>, %118, %cst_19 [0] : vector<16x16xf32> to vector<16xf32>
    %120 = vector.shape_cast %119 : vector<16xf32> to vector<1x16xf32>
    %121 = vector.extract_strided_slice %18 {offsets = [5, 0], sizes = [1, 16], strides = [1, 1]} : vector<8x16xf32> to vector<1x16xf32>
    %122 = arith.addf %121, %120 : vector<1x16xf32>
    %123 = math.tanh %122 : vector<1x16xf32>
    %124 = arith.mulf %123, %7 : vector<1x16xf32>
    %cst_20 = arith.constant dense<0.000000e+00> : vector<1xf32>
    %125 = vector.multi_reduction <add>, %124, %cst_20 [1] : vector<1x16xf32> to vector<1xf32>
    %126 = vector.shape_cast %125 : vector<1xf32> to vector<1x1xf32>
    %127 = arith.addf %126, %8 : vector<1x1xf32>
    %c5_i32 = arith.constant 5 : i32
    %128 = vector.broadcast %c5_i32 : i32 to vector<1x8xi32>
    %129 = arith.cmpi eq, %25, %128 : vector<1x8xi32>
    %130 = arith.extui %129 : vector<1x8xi1> to vector<1x8xi32>
    %131 = arith.sitofp %130 : vector<1x8xi32> to vector<1x8xf32>
    %132 = vector.broadcast %127 : vector<1x1xf32> to vector<1x8xf32>
    %133 = arith.mulf %132, %131 : vector<1x8xf32>
    %134 = arith.addf %116, %133 : vector<1x8xf32>
    %135 = vector.broadcast %123 : vector<1x16xf32> to vector<16x16xf32>
    %136 = arith.mulf %1, %135 : vector<16x16xf32>
    %cst_21 = arith.constant dense<0.000000e+00> : vector<16xf32>
    %137 = vector.multi_reduction <add>, %136, %cst_21 [1] : vector<16x16xf32> to vector<16xf32>
    %138 = vector.shape_cast %137 : vector<16xf32> to vector<16x1xf32>
    %139 = vector.extract_strided_slice %24 {offsets = [0, 6], sizes = [16, 1], strides = [1, 1]} : vector<16x8xf32> to vector<16x1xf32>
    %140 = arith.addf %139, %138 : vector<16x1xf32>
    %141 = math.tanh %140 : vector<16x1xf32>
    %142 = arith.mulf %12, %141 : vector<16x1xf32>
    %cst_22 = arith.constant dense<0.000000e+00> : vector<1xf32>
    %143 = vector.multi_reduction <add>, %142, %cst_22 [0] : vector<16x1xf32> to vector<1xf32>
    %144 = vector.shape_cast %143 : vector<1xf32> to vector<1x1xf32>
    %145 = arith.addf %144, %8 : vector<1x1xf32>
    %c6_i32 = arith.constant 6 : i32
    %146 = vector.broadcast %c6_i32 : i32 to vector<1x8xi32>
    %147 = arith.cmpi eq, %25, %146 : vector<1x8xi32>
    %148 = arith.extui %147 : vector<1x8xi1> to vector<1x8xi32>
    %149 = arith.sitofp %148 : vector<1x8xi32> to vector<1x8xf32>
    %150 = vector.broadcast %145 : vector<1x1xf32> to vector<1x8xf32>
    %151 = arith.mulf %150, %149 : vector<1x8xf32>
    %152 = arith.addf %134, %151 : vector<1x8xf32>
    %153 = vector.broadcast %141 : vector<16x1xf32> to vector<16x16xf32>
    %154 = arith.mulf %2, %153 : vector<16x16xf32>
    %cst_23 = arith.constant dense<0.000000e+00> : vector<16xf32>
    %155 = vector.multi_reduction <add>, %154, %cst_23 [0] : vector<16x16xf32> to vector<16xf32>
    %156 = vector.shape_cast %155 : vector<16xf32> to vector<1x16xf32>
    %157 = vector.extract_strided_slice %18 {offsets = [7, 0], sizes = [1, 16], strides = [1, 1]} : vector<8x16xf32> to vector<1x16xf32>
    %158 = arith.addf %157, %156 : vector<1x16xf32>
    %159 = math.tanh %158 : vector<1x16xf32>
    %160 = arith.mulf %159, %7 : vector<1x16xf32>
    %cst_24 = arith.constant dense<0.000000e+00> : vector<1xf32>
    %161 = vector.multi_reduction <add>, %160, %cst_24 [1] : vector<1x16xf32> to vector<1xf32>
    %162 = vector.shape_cast %161 : vector<1xf32> to vector<1x1xf32>
    %163 = arith.addf %162, %8 : vector<1x1xf32>
    %c7_i32 = arith.constant 7 : i32
    %164 = vector.broadcast %c7_i32 : i32 to vector<1x8xi32>
    %165 = arith.cmpi eq, %25, %164 : vector<1x8xi32>
    %166 = arith.extui %165 : vector<1x8xi1> to vector<1x8xi32>
    %167 = arith.sitofp %166 : vector<1x8xi32> to vector<1x8xf32>
    %168 = vector.broadcast %163 : vector<1x1xf32> to vector<1x8xf32>
    %169 = arith.mulf %168, %167 : vector<1x8xf32>
    %170 = arith.addf %152, %169 : vector<1x8xf32>
    %c0_25 = arith.constant 0 : index
    %c0_26 = arith.constant 0 : index
    %171 = vector.load %arg5[%c0_25, %c0_26] : memref<1x8xf32, #tpu.memory_space<vmem>>, vector<1x8xf32>
    tpu.vector_store %arg5[%c0_25, %c0_26], %170 {strides = array<i32>} : memref<1x8xf32, #tpu.memory_space<vmem>>, vector<1x8xf32>,
    %c0_27 = arith.constant 0 : index
    %c0_28 = arith.constant 0 : index
    %172 = vector.load %arg6[%c0_27, %c0_28] : memref<1x16xf32, #tpu.memory_space<vmem>>, vector<1x16xf32>
    tpu.vector_store %arg6[%c0_27, %c0_28], %159 {strides = array<i32>} : memref<1x16xf32, #tpu.memory_space<vmem>>, vector<1x16xf32>,
    return
  }
}

</mosaic_0001>

<llo_original>
// kernel: net_forward.1
$region0: #{net_forward.1}
  #allocation0 [shape = 'u32[]', space=smem, size = 0x4, offset = 0x4, fixed_abs, tag = 'smem constant byte address 0x4 - core index']
  #allocation1 [shape = 'u32[144,128]{1,0:T(1,128)}', space=vmem, size = 0x12000, scoped, tag = 'internal scratch']
  %s0 = inlined_call_operand.vmem [shape: f32[1,8], index: 0, kind: input, shape index: {}]
  %s1 = inlined_call_operand.vmem [shape: f32[8,1], index: 1, kind: input, shape index: {}]
  %s2 = inlined_call_operand.vmem [shape: f32[32,16], index: 2, kind: input, shape index: {}]
  %s3 = inlined_call_operand.vmem [shape: f32[5,16], index: 3, kind: input, shape index: {}]
  %s4 = inlined_call_operand.vmem [shape: f32[16,3], index: 4, kind: input, shape index: {}]
  %s5 = inlined_call_operand.hbm [shape: f32[1,8], index: 5, kind: output, shape index: {0}]
  %s6 = inlined_call_operand.hbm [shape: f32[1,16], index: 6, kind: output, shape index: {1}]
  %7 = xla_tuple %s5, %s6
  %s8 = sld [smem:[#allocation0]]
  $region38: #{net_forward.1} parent=0
    _
  %s10 = ssub.s32 1, %s8
  %s11 = scalar_select 0, %s10, %s8
  $region1: #{net_forward.1} parent=0
    #allocation2 [shape = 'u8[512]{0}', space=vmem, size = 0x400, scoped, tag = 'output window, operand 0, single buffered']
    #allocation3 [shape = 's32[1]{0}', space=sflag, size = 0x4, scoped, tag = 'scoped memory for net_forward.1']
    #allocation4 [shape = 'u8[512]{0}', space=vmem, size = 0x400, scoped, tag = 'output window, operand 1, single buffered']
    #allocation5 [shape = 's32[1]{0}', space=sflag, size = 0x4, scoped, tag = 'scoped memory for net_forward.1']
    %12 = vsyncpa [#allocation3], 0
    %13 = vsyncpa [#allocation5], 0
    // Predicated region
    $region2: #{net_forward.1} parent=1 // pred_check
      _
    $region3: #{net_forward.1} parent=1 // pred_check_branch
      %15 = sbr.rel (0) target = $region5
    $region4: #{net_forward.1} parent=1 // pred_region
      _
    $region5: #{net_forward.1} parent=1 // pred_fallthru
      _
    // Predicated region
    $region6: #{net_forward.1} parent=1 // pred_check
      _
    $region7: #{net_forward.1} parent=1 // pred_check_branch
      %17 = sbr.rel (0) target = $region9
    $region8: #{net_forward.1} parent=1 // pred_region
      _
    $region9: #{net_forward.1} parent=1 // pred_fallthru
      _
    // Predicated region
    $region10: #{net_forward.1} parent=1 // pred_check
      _
    $region11: #{net_forward.1} parent=1 // pred_check_branch
      %19 = sbr.rel (0) target = $region13
    $region12: #{net_forward.1} parent=1 // pred_region
      _
    $region13: #{net_forward.1} parent=1 // pred_fallthru
      _
    // Predicated region
    $region14: #{net_forward.1} parent=1 // pred_check
      _
    $region15: #{net_forward.1} parent=1 // pred_check_branch
      %21 = sbr.rel (0) target = $region17
    $region16: #{net_forward.1} parent=1 // pred_region
      _
    $region17: #{net_forward.1} parent=1 // pred_fallthru
      _
    // Predicated region
    $region18: #{net_forward.1} parent=1 // pred_check
      _
    $region19: #{net_forward.1} parent=1 // pred_check_branch
      %23 = sbr.rel (0) target = $region21
    $region20: #{net_forward.1} parent=1 // pred_region
      _
    $region21: #{net_forward.1} parent=1 // pred_fallthru
      _
    %v24 = vld [vmem:[%s2] sm:$0xff]
    %v25 = vld [vmem:[%s2 + $0x8] sm:$0xff]
    %v26 = vld [vmem:[%s2 + $0x10] sm:$0xff]
    %v27 = vld [vmem:[%s2 + $0x18] sm:$0xff]
    %v28 = vld [vmem:[%s3] sm:$0x1f]
    %v29 = vld [vmem:[%s4] sm:$0xff]
    %v30 = vld [vmem:[%s4 + $0x8] sm:$0xff]
    %v31 = vld [vmem:[%s1] sm:$0xff]
    %33 = vset.pattern.permute.xlu0 0
    %34 = vperm.xlu0 %33, %v31
    %v35 = vpop.permute.xlu0 %34
    %v37 = vlaneseq
    %v38 = vshrl.u32 %v37, 7
    %v39 = vsub.s32 2, %v38
    %v40 = vrot.slane %v28, %v39
    %v41 = vmul.f32 %v35, %v40
    %v42 = vlaneseq
    %v43 = vshrl.u32 %v42, 7
    %v44 = vsub.s32 1, %v43
    %v45 = vrot.slane %v28, %v44
    %v46 = vadd.f32 %v41, %v45
    %v47 = vld [vmem:[%s0] sm:$0x1]
    %49 = vset.pattern.permute.xlu0 1
    %50 = vperm.xlu0 %49, %v29
    %v51 = vpop.permute.xlu0 %50
    %54 = vset.pattern.permute.xlu0 1
    %55 = vperm.xlu0 %54, %v30
    %v56 = vpop.permute.xlu0 %55
    %v59 = vlaneseq
    %v60 = vshrl.u32 %v59, 7
    %v61 = vsub.s32 0, %v60
    %v62 = vrot.slane %v47, %v61
    %v64 = vmul.f32 %v51, %v62
    %v65 = vmul.f32 %v56, %v62
    %66 = vset.pattern.permute.xlu0 0
    %67 = vperm.xlu0 %66, %v29
    %v68 = vpop.permute.xlu0 %67
    %70 = vset.pattern.permute.xlu0 0
    %71 = vperm.xlu0 %70, %v30
    %v72 = vpop.permute.xlu0 %71
    %v74 = vadd.f32 %v64, %v68
    %v75 = vadd.f32 %v65, %v72
    %v76 = vlaneseq
    %v77 = vand.u32 %v76, 127
    %v78 = vlaneseq
    %v79 = vshrl.u32 %v78, 7
    %v80 = vsub.s32 0, %v79
    %v81 = vrot.slane %v28, %v80
    %v82 = vmul.f32 %v24, %v81
    %v83 = vmul.f32 %v25, %v81
    %vm84 = vcmask 130048
    %v85 = vsel %vm84, %v82, 0.0
    %86 = vadd.xlane.f32.xlu0 %v85
    %v87 = vpop.xlane.xlu0 %86
    %v88 = vsel %vm84, %v83, 0.0
    %89 = vadd.xlane.f32.xlu0 %v88
    %v90 = vpop.xlane.xlu0 %89
    %v91 = vadd.f32 %v74, %v87
    %v92 = vadd.f32 %v75, %v90
    %v93 = vtanh.pop %v91
    %v94 = vtanh.pop %v92
    %97 = vrot.lane.b32.xlu0 %v93, 2
    %v98 = vpop.permute.xlu0 %97
    %99 = vrot.lane.b32.xlu0 %v94, 2
    %v100 = vpop.permute.xlu0 %99
    %v103 = vmul.f32 %v29, %v98
    %v104 = vmul.f32 %v30, %v100
    %vm105 = vcmask 23568
    %v106 = vsel %vm105, %v103, 0.0
    %v107 = vsel %vm105, %v104, 0.0
    %v108 = vadd.f32 %v106, %v107
    %v109 = vrot.slane %v108, 4
    %v110 = vadd.f32 %v108, %v109
    %v111 = vrot.slane %v110, 2
    %v112 = vadd.f32 %v110, %v111
    %v113 = vrot.slane %v112, 1
    %v114 = vadd.f32 %v112, %v113
    %v116 = vrot.slane %v28, 4
    %117 = vrot.lane.b32.xlu0 %v116, 2
    %v118 = vpop.permute.xlu0 %117
    %v120 = vadd.f32 %v114, %v118
    %vm121 = vcmp.eq.s32.totalorder %v77, 0
    %v122 = vsel %vm121, 1, 0
    %v123 = vcvt.s32.f32 %v122
    %125 = vset.pattern.permute.xlu0 2
    %126 = vperm.xlu0 %125, %v120
    %v127 = vpop.permute.xlu0 %126
    %v129 = vmul.f32 %v127, %v123
    %v130 = vadd.f32 %v129, 0.0
    %131 = vset.pattern.permute.xlu0 0
    %132 = vperm.xlu0 %131, %v93
    %v133 = vpop.permute.xlu0 %132
    %135 = vset.pattern.permute.xlu0 0
    %136 = vperm.xlu0 %135, %v94
    %v137 = vpop.permute.xlu0 %136
    %v139 = vmul.f32 %v26, %v133
    %v140 = vmul.f32 %v27, %v137
    %v141 = vsel %vm84, %v139, 0.0
    %v142 = vsel %vm84, %v140, 0.0
    %v143 = vadd.f32 %v141, %v142
    %v144 = vrot.slane %v143, 4
    %v145 = vadd.f32 %v143, %v144
    %v146 = vrot.slane %v145, 2
    %v147 = vadd.f32 %v145, %v146
    %v148 = vrot.slane %v147, 1
    %v149 = vadd.f32 %v147, %v148
    %v150 = vadd.f32 %v46, %v149
    %v151 = vtanh.pop %v150
    %v152 = vrot.slane %v28, 2
    %v154 = vmul.f32 %v151, %v152
    %vm155 = vcmask 123905
    %v156 = vsel %vm155, %v154, 0.0
    %157 = vadd.xlane.f32.xlu0 %v156
    %v158 = vpop.xlane.xlu0 %157
    %v159 = vrot.slane %v28, 3
    %v161 = vadd.f32 %v158, %v159
    %vm162 = vcmp.eq.s32.totalorder %v77, 1
    %v163 = vsel %vm162, 1, 0
    %v164 = vcvt.s32.f32 %v163
    %166 = vset.pattern.permute.xlu0 0
    %167 = vperm.xlu0 %166, %v161
    %v168 = vpop.permute.xlu0 %167
    %v170 = vmul.f32 %v168, %v164
    %v172 = vrot.slane %v170, 1
    %v174 = vadd.f32 %v130, %v172
    %v175 = vlaneseq
    %v176 = vshrl.u32 %v175, 7
    %v177 = vsub.s32 1, %v176
    %v178 = vrot.slane %v151, %v177
    %v179 = vmul.f32 %v24, %v178
    %v180 = vmul.f32 %v25, %v178
    %v181 = vsel %vm84, %v179, 0.0
    %182 = vadd.xlane.f32.xlu0 %v181
    %v183 = vpop.xlane.xlu0 %182
    %v184 = vsel %vm84, %v180, 0.0
    %185 = vadd.xlane.f32.xlu0 %v184
    %v186 = vpop.xlane.xlu0 %185
    %v187 = vadd.f32 %v74, %v183
    %v188 = vadd.f32 %v75, %v186
    %v189 = vtanh.pop %v187
    %v190 = vtanh.pop %v188
    %v191 = vmul.f32 %v29, %v189
    %v192 = vmul.f32 %v30, %v190
    %v193 = vsel %vm105, %v191, 0.0
    %v194 = vsel %vm105, %v192, 0.0
    %v195 = vadd.f32 %v193, %v194
    %v196 = vrot.slane %v195, 4
    %v197 = vadd.f32 %v195, %v196
    %v198 = vrot.slane %v197, 2
    %v199 = vadd.f32 %v197, %v198
    %v200 = vrot.slane %v199, 1
    %v201 = vadd.f32 %v199, %v200
    %v202 = vadd.f32 %v201, %v118
    %vm203 = vcmp.eq.s32.totalorder %v77, 2
    %v204 = vsel %vm203, 1, 0
    %v205 = vcvt.s32.f32 %v204
    %207 = vset.pattern.permute.xlu0 2
    %208 = vperm.xlu0 %207, %v202
    %v209 = vpop.permute.xlu0 %208
    %v211 = vmul.f32 %v209, %v205
    %v212 = vadd.f32 %v174, %v211
    %214 = vset.pattern.permute.xlu0 2
    %215 = vperm.xlu0 %214, %v189
    %v216 = vpop.permute.xlu0 %215
    %219 = vset.pattern.permute.xlu0 2
    %220 = vperm.xlu0 %219, %v190
    %v221 = vpop.permute.xlu0 %220
    %v223 = vmul.f32 %v26, %v216
    %v224 = vmul.f32 %v27, %v221
    %v225 = vsel %vm84, %v223, 0.0
    %v226 = vsel %vm84, %v224, 0.0
    %v227 = vadd.f32 %v225, %v226
    %v228 = vrot.slane %v227, 4
    %v229 = vadd.f32 %v227, %v228
    %v230 = vrot.slane %v229, 2
    %v231 = vadd.f32 %v229, %v230
    %v232 = vrot.slane %v231, 1
    %v233 = vadd.f32 %v231, %v232
    %v234 = vadd.f32 %v46, %v233
    %v235 = vtanh.pop %v234
    %v236 = vmul.f32 %v235, %v28
    %vm237 = vcmask 125955
    %v238 = vsel %vm237, %v236, 0.0
    %239 = vadd.xlane.f32.xlu0 %v238
    %v240 = vpop.xlane.xlu0 %239
    %v241 = vrot.slane %v28, 1
    %v243 = vadd.f32 %v240, %v241
    %vm244 = vcmp.eq.s32.totalorder %v77, 3
    %v245 = vsel %vm244, 1, 0
    %v246 = vcvt.s32.f32 %v245
    %248 = vset.pattern.permute.xlu0 0
    %249 = vperm.xlu0 %248, %v243
    %v250 = vpop.permute.xlu0 %249
    %v252 = vmul.f32 %v250, %v246
    %v254 = vrot.slane %v252, 3
    %v256 = vadd.f32 %v212, %v254
    %v257 = vlaneseq
    %v258 = vshrl.u32 %v257, 7
    %v259 = vsub.s32 3, %v258
    %v260 = vrot.slane %v235, %v259
    %v261 = vmul.f32 %v24, %v260
    %v262 = vmul.f32 %v25, %v260
    %v263 = vsel %vm84, %v261, 0.0
    %264 = vadd.xlane.f32.xlu0 %v263
    %v265 = vpop.xlane.xlu0 %264
    %v266 = vsel %vm84, %v262, 0.0
    %267 = vadd.xlane.f32.xlu0 %v266
    %v268 = vpop.xlane.xlu0 %267
    %v269 = vadd.f32 %v74, %v265
    %v270 = vadd.f32 %v75, %v268
    %v271 = vtanh.pop %v269
    %v272 = vtanh.pop %v270
    %275 = vrot.lane.b32.xlu0 %v271, 126
    %v276 = vpop.permute.xlu0 %275
    %277 = vrot.lane.b32.xlu0 %v272, 126
    %v278 = vpop.permute.xlu0 %277
    %v281 = vmul.f32 %v29, %v276
    %v282 = vmul.f32 %v30, %v278
    %v283 = vsel %vm105, %v281, 0.0
    %v284 = vsel %vm105, %v282, 0.0
    %v285 = vadd.f32 %v283, %v284
    %v286 = vrot.slane %v285, 4
    %v287 = vadd.f32 %v285, %v286
    %v288 = vrot.slane %v287, 2
    %v289 = vadd.f32 %v287, %v288
    %v290 = vrot.slane %v289, 1
    %v291 = vadd.f32 %v289, %v290
    %v292 = vadd.f32 %v291, %v118
    %vm293 = vcmp.eq.s32.totalorder %v77, 4
    %v294 = vsel %vm293, 1, 0
    %v295 = vcvt.s32.f32 %v294
    %297 = vset.pattern.permute.xlu0 2
    %298 = vperm.xlu0 %297, %v292
    %v299 = vpop.permute.xlu0 %298
    %v301 = vmul.f32 %v299, %v295
    %v302 = vadd.f32 %v256, %v301
    %303 = vset.pattern.permute.xlu0 4
    %304 = vperm.xlu0 %303, %v271
    %v305 = vpop.permute.xlu0 %304
    %307 = vset.pattern.permute.xlu0 4
    %308 = vperm.xlu0 %307, %v272
    %v309 = vpop.permute.xlu0 %308
    %v311 = vmul.f32 %v26, %v305
    %v312 = vmul.f32 %v27, %v309
    %v313 = vsel %vm84, %v311, 0.0
    %v314 = vsel %vm84, %v312, 0.0
    %v315 = vadd.f32 %v313, %v314
    %v316 = vrot.slane %v315, 4
    %v317 = vadd.f32 %v315, %v316
    %v318 = vrot.slane %v317, 2
    %v319 = vadd.f32 %v317, %v318
    %v320 = vrot.slane %v319, 1
    %v321 = vadd.f32 %v319, %v320
    %v322 = vadd.f32 %v46, %v321
    %v323 = vtanh.pop %v322
    %v324 = vrot.slane %v28, 6
    %v326 = vmul.f32 %v323, %v324
    %vm327 = vcmask 128005
    %v328 = vsel %vm327, %v326, 0.0
    %329 = vadd.xlane.f32.xlu0 %v328
    %v330 = vpop.xlane.xlu0 %329
    %v331 = vrot.slane %v28, 7
    %v333 = vadd.f32 %v330, %v331
    %vm334 = vcmp.eq.s32.totalorder %v77, 5
    %v335 = vsel %vm334, 1, 0
    %v336 = vcvt.s32.f32 %v335
    %338 = vset.pattern.permute.xlu0 0
    %339 = vperm.xlu0 %338, %v333
    %v340 = vpop.permute.xlu0 %339
    %v342 = vmul.f32 %v340, %v336
    %v344 = vrot.slane %v342, 5
    %v346 = vadd.f32 %v302, %v344
    %v347 = vlaneseq
    %v348 = vshrl.u32 %v347, 7
    %v349 = vsub.s32 5, %v348
    %v350 = vrot.slane %v323, %v349
    %v351 = vmul.f32 %v24, %v350
    %v352 = vmul.f32 %v25, %v350
    %v353 = vsel %vm84, %v351, 0.0
    %354 = vadd.xlane.f32.xlu0 %v353
    %v355 = vpop.xlane.xlu0 %354
    %v356 = vsel %vm84, %v352, 0.0
    %357 = vadd.xlane.f32.xlu0 %v356
    %v358 = vpop.xlane.xlu0 %357
    %v359 = vadd.f32 %v74, %v355
    %v360 = vadd.f32 %v75, %v358
    %v361 = vtanh.pop %v359
    %v362 = vtanh.pop %v360
    %365 = vrot.lane.b32.xlu0 %v361, 124
    %v366 = vpop.permute.xlu0 %365
    %367 = vrot.lane.b32.xlu0 %v362, 124
    %v368 = vpop.permute.xlu0 %367
    %v371 = vmul.f32 %v29, %v366
    %v372 = vmul.f32 %v30, %v368
    %v373 = vsel %vm105, %v371, 0.0
    %v374 = vsel %vm105, %v372, 0.0
    %v375 = vadd.f32 %v373, %v374
    %v376 = vrot.slane %v375, 4
    %v377 = vadd.f32 %v375, %v376
    %v378 = vrot.slane %v377, 2
    %v379 = vadd.f32 %v377, %v378
    %v380 = vrot.slane %v379, 1
    %v381 = vadd.f32 %v379, %v380
    %v382 = vadd.f32 %v381, %v118
    %vm383 = vcmp.eq.s32.totalorder %v77, 6
    %v384 = vsel %vm383, 1, 0
    %v385 = vcvt.s32.f32 %v384
    %387 = vset.pattern.permute.xlu0 2
    %388 = vperm.xlu0 %387, %v382
    %v389 = vpop.permute.xlu0 %388
    %v391 = vmul.f32 %v389, %v385
    %v392 = vadd.f32 %v346, %v391
    %393 = vset.pattern.permute.xlu0 6
    %394 = vperm.xlu0 %393, %v361
    %v395 = vpop.permute.xlu0 %394
    %397 = vset.pattern.permute.xlu0 6
    %398 = vperm.xlu0 %397, %v362
    %v399 = vpop.permute.xlu0 %398
    %v401 = vmul.f32 %v26, %v395
    %v402 = vmul.f32 %v27, %v399
    %v403 = vsel %vm84, %v401, 0.0
    %v404 = vsel %vm84, %v402, 0.0
    %v405 = vadd.f32 %v403, %v404
    %v406 = vrot.slane %v405, 4
    %v407 = vadd.f32 %v405, %v406
    %v408 = vrot.slane %v407, 2
    %v409 = vadd.f32 %v407, %v408
    %v410 = vrot.slane %v409, 1
    %v411 = vadd.f32 %v409, %v410
    %v412 = vadd.f32 %v46, %v411
    %v413 = vtanh.pop %v412
    %v415 = vmul.f32 %v413, %v116
    %vm416 = vcmask 130055
    %v417 = vsel %vm416, %v415, 0.0
    %418 = vadd.xlane.f32.xlu0 %v417
    %v419 = vpop.xlane.xlu0 %418
    %v420 = vrot.slane %v28, 5
    %v422 = vadd.f32 %v419, %v420
    %vm423 = vcmp.eq.s32.totalorder %v77, 7
    %v424 = vsel %vm423, 1, 0
    %v425 = vcvt.s32.f32 %v424
    %427 = vset.pattern.permute.xlu0 0
    %428 = vperm.xlu0 %427, %v422
    %v429 = vpop.permute.xlu0 %428
    %v431 = vmul.f32 %v429, %v425
    %v433 = vrot.slane %v431, 7
    %v435 = vadd.f32 %v392, %v433
    %vm436 = vcmask 57344
    %437 = vst.msk [vmem:[#allocation2] sm:$0x1] %vm436, %v435
    %438 = vst.msk [vmem:[#allocation4 - $0x7] sm:$0x80] %vm416, %v413
    // Predicated region
    $region22: #{net_forward.1} parent=1 // pred_check
      _
    $region23: #{net_forward.1} parent=1 // pred_check_branch
      %440 = sbr.rel (0) target = $region25
    $region24: #{net_forward.1} parent=1 // pred_region
      %s442 = ssub.s32 16, 16
      %443 = vsyncadd [#allocation3], %s442
      %s445 = sshll.u32 [#allocation2], 4
      %s446 = int_to_ptr.vmem [resolvable:$true] %s445
      %448 = dma.vmem_to_hbm [thread:$0]  %s446, 16, %s5, [#allocation3]
    $region25: #{net_forward.1} parent=1 // pred_fallthru
      _
    // Predicated region
    $region26: #{net_forward.1} parent=1 // pred_check
      _
    $region27: #{net_forward.1} parent=1 // pred_check_branch
      %450 = sbr.rel (0) target = $region29
    $region28: #{net_forward.1} parent=1 // pred_region
      %s452 = ssub.s32 16, 16
      %453 = vsyncadd [#allocation5], %s452
      %s455 = sshll.u32 [#allocation4], 4
      %s456 = int_to_ptr.vmem [resolvable:$true] %s455
      %458 = dma.vmem_to_hbm [thread:$0]  %s456, 16, %s6, [#allocation5]
    $region29: #{net_forward.1} parent=1 // pred_fallthru
      _
    // Predicated region
    $region30: #{net_forward.1} parent=1 // pred_check
      _
    $region31: #{net_forward.1} parent=1 // pred_check_branch
      %460 = sbr.rel (0) target = $region33
    $region32: #{net_forward.1} parent=1 // pred_region
      %461 = dma.done [#allocation3], 16
    $region33: #{net_forward.1} parent=1 // pred_fallthru
      _
    // Predicated region
    $region34: #{net_forward.1} parent=1 // pred_check
      _
    $region35: #{net_forward.1} parent=1 // pred_check_branch
      %463 = sbr.rel (0) target = $region37
    $region36: #{net_forward.1} parent=1 // pred_region
      %464 = dma.done [#allocation5], 16
    $region37: #{net_forward.1} parent=1 // pred_fallthru
      _
    %465 = vsyncpa [#allocation3], 1
    %466 = vsyncpa [#allocation5], 1

</llo_original>
